<compile_context>
chip_gen: v7x
topology: tpu7x:2x2x1
jax: 0.10.0
libtpu: 0.0.40
codegen_flags: <defaults>
</compile_context>

<pallas_src>
import math

import jax
import jax.numpy as jnp
from jax import lax
from jax.experimental import pallas as pl
from jax.experimental.pallas import tpu as pltpu

_TCHUNK = 8  # sublane depth: one full (8, lanes) tile per store


# ----------------------------------------------------------------------------- kernels
def _leaky_order0_kernel(decay_ref, x_ref, inv_den_ref, out_ref):
    """Order-0 (unigram). x_ref: (T8, tile_n) bf16, inv_den_ref: (T8, 1) f32."""
    T8, N = x_ref.shape
    decay_v = jnp.full((1, N), decay_ref[0], jnp.float32)  # hoisted broadcast

    def chunk(c, n_ones):
        t0 = pl.multiple_of(c * _TCHUNK, _TCHUNK)
        x_blk = x_ref[pl.ds(t0, _TCHUNK), :].astype(jnp.float32)  # (8, N)
        inv_blk = inv_den_ref[pl.ds(t0, _TCHUNK), :]              # (8, 1)
        rows = []
        for k in range(_TCHUNK):                                  # unrolled
            n_ones = decay_v * n_ones + x_blk[k:k + 1, :]
            rows.append(n_ones)
        tile = jnp.concatenate(rows, axis=0)                      # (8, N)
        out_ref[pl.ds(t0, _TCHUNK), :] = (tile + 1.0) * inv_blk   # unmasked vst
        return n_ones

    lax.fori_loop(0, T8 // _TCHUNK, chunk, jnp.zeros((1, N), jnp.float32))


def _leaky_order1_kernel(decay_ref, x_ref, out_ref):
    """Order-1 (transition / bigram). x_ref: (T8, tile_n) bf16."""
    T8, N = x_ref.shape
    decay_v = jnp.full((1, N), decay_ref[0], jnp.float32)  # hoisted broadcast

    def chunk(c, carry):
        n10, n11, na0, na1, x_prev = carry
        t0 = pl.multiple_of(c * _TCHUNK, _TCHUNK)
        x_blk = x_ref[pl.ds(t0, _TCHUNK), :].astype(jnp.float32)  # (8, N)
        rows = []
        for k in range(_TCHUNK):                                  # unrolled
            x_t = x_blk[k:k + 1, :]
            not_prev = 1.0 - x_prev
            # Exact algebraic simplification of the reference updates:
            #   (n + a)*(1-xp) + n*xp == n + a*(1-xp)
            n10 = decay_v * (n10 + x_t * not_prev)
            na0 = decay_v * (na0 + not_prev)
            n11 = decay_v * (n11 + x_t * x_prev)
            na1 = decay_v * (na1 + x_prev)
            p0 = (n10 + 1.0) * pl.reciprocal(na0 + 2.0, approx=True)
            p1 = (n11 + 1.0) * pl.reciprocal(na1 + 2.0, approx=True)
            rows.append(p0 * (1.0 - x_t) + p1 * x_t)              # blend
            x_prev = x_t
        out_ref[pl.ds(t0, _TCHUNK), :] = jnp.concatenate(rows, axis=0)
        return (n10, n11, na0, na1, x_prev)

    z = jnp.zeros((1, N), jnp.float32)
    lax.fori_loop(0, T8 // _TCHUNK, chunk, (z, z, z, z, z))


# ----------------------------------------------------------------------------- wrapper
def leaky_integrator_forward(x, decay_rate, order=0):
    """x: (T, N, C) float; returns (T, N, 1) f32, matching LeakyIntegrator.forward.

    Only channel 0 drives the counts (as in the PyTorch module).
    """
    # TODO(synk): order-1 with C > 1 input channels would broadcast the blend
    # over channels; only the standard C == 1 case is implemented here.
    T, N, _ = x.shape
    # x is a 0/1 symbol stream -> bf16 is exact and halves HBM read traffic;
    # all accumulation happens in f32 inside the kernel.
    x2d = x[:, :, 0].astype(jnp.bfloat16)

    T8 = -(-T // _TCHUNK) * _TCHUNK          # pad time to a sublane multiple
    Np = -(-N // 128) * 128                  # pad seqs to a lane multiple
    if (T8, Np) != (T, N):
        x2d = jnp.pad(x2d, ((0, T8 - T), (0, Np - N)))

    # Largest lane tile (<= 512) that divides Np; small problems keep a single
    # grid step (per-grid-step overhead would otherwise dominate).
    tile_n = next(t for t in (512, 256, 128) if Np % t == 0)
    grid = (Np // tile_n,)

    decay = jnp.asarray([decay_rate], dtype=jnp.float32)     # (1,) scalar in SMEM
    compiler_params = pltpu.CompilerParams(
        # N tiles are independent -> shard across the 2 TensorCores on v7x
        # (harmless no-op on single-core v5e/v6e).
        dimension_semantics=("parallel",),
        vmem_limit_bytes=32 * 1024 * 1024,
    )
    x_spec = pl.BlockSpec((T8, tile_n), lambda j: (0, j))
    out_spec = pl.BlockSpec((T8, tile_n), lambda j: (0, j))
    smem_spec = pl.BlockSpec(memory_space=pltpu.MemorySpace.SMEM)

    if order == 1:
        out2d = pl.pallas_call(
            _leaky_order1_kernel,
            out_shape=jax.ShapeDtypeStruct((T8, Np), jnp.float32),
            grid=grid,
            in_specs=[smem_spec, x_spec],
            out_specs=out_spec,
            compiler_params=compiler_params,
        )(decay, x2d)
    else:
        # n_all is input independent: precompute 1/(n_all_t + 2) once so the
        # kernel has no divide and only one loop-carried vector.
        d = jnp.float32(decay_rate)
        _, n_all = lax.scan(lambda c, _: ((d * c + 1.0),) * 2,
                            jnp.float32(0.0), None, length=T8)
        inv_denom = (1.0 / (n_all + 2.0)).reshape(T8, 1)
        out2d = pl.pallas_call(
            _leaky_order0_kernel,
            out_shape=jax.ShapeDtypeStruct((T8, Np), jnp.float32),
            grid=grid,
            in_specs=[smem_spec, x_spec,
                      pl.BlockSpec((T8, 1), lambda j: (0, 0))],
            out_specs=out_spec,
            compiler_params=compiler_params,
        )(decay, x2d, inv_denom)

    return out2d[:T, :N, None]                                # (T, N, 1)


# ----------------------------------------------------------------------------- references
def _reference_order0(x, decay):
    x2d = x[:, :, 0]
    z = jnp.zeros(x2d.shape[1], jnp.float32)

    def step(carry, x_t):
        n_ones, n_all = carry
        n_ones = decay * n_ones + x_t
        n_all = decay * n_all + 1.0
        return (n_ones, n_all), (n_ones + 1.0) / (n_all + 2.0)

    _, p = lax.scan(step, (z, z), x2d)
    return p[:, :, None]


def _reference_order1(x, decay):
    x2d = x[:, :, 0]
    z = jnp.zeros(x2d.shape[1], jnp.float32)

    def step(carry, x_t):
        n10, n11, na0, na1, xp = carry
        n10 = decay * ((n10 + x_t) * (1.0 - xp) + n10 * xp)
        na0 = decay * ((na0 + 1.0) * (1.0 - xp) + na0 * xp)
        n11 = decay * ((n11 + x_t) * xp + n11 * (1.0 - xp))
        na1 = decay * ((na1 + 1.0) * xp + na1 * (1.0 - xp))
        p0 = (n10 + 1.0) / (na0 + 2.0)
        p1 = (n11 + 1.0) / (na1 + 2.0)
        return (n10, n11, na0, na1, x_t), p0 * (1.0 - x_t) + p1 * x_t

    _, p = lax.scan(step, (z, z, z, z, z), x2d)
    return p[:, :, None]


# ----------------------------------------------------------------------------- main
if __name__ == "__main__":
    # Deterministic parameter "init" (midpoint of uniform(0.5, 2.5) loglifetime).
    loglifetime = 1.5
    lifetime = 10.0 ** loglifetime
    decay_rate = math.exp(-1.0 / lifetime)

    key = jax.random.PRNGKey(0)

    # Module layout: (n_time_steps, n_seqs, 1).
    T, N, C = 8, 128, 1
    x = jax.random.bernoulli(key, p=0.5, shape=(T, N, C)).astype(jnp.float32)

    out0 = jax.block_until_ready(leaky_integrator_forward(x, decay_rate, order=0))
    ref0 = _reference_order0(x, jnp.float32(decay_rate))
    assert out0.shape == (T, N, 1), out0.shape
    assert jnp.allclose(out0, ref0, atol=1e-5, rtol=1e-5), "order-0 mismatch"

    out1 = jax.block_until_ready(leaky_integrator_forward(x, decay_rate, order=1))
    ref1 = _reference_order1(x, jnp.float32(decay_rate))
    assert out1.shape == (T, N, 1), out1.shape
    # order-1 uses the EUP approx reciprocal (~1e-3 rel error) on the hot path.
    assert jnp.allclose(out1, ref1, atol=5e-3, rtol=5e-3), "order-1 mismatch"

    # Exercise T/N padding and a multi-step "parallel" grid over N.
    T2, N2 = 13, 300
    x2 = jax.random.bernoulli(jax.random.PRNGKey(0), p=0.5,
                              shape=(T2, N2, 1)).astype(jnp.float32)
    out2 = jax.block_until_ready(leaky_integrator_forward(x2, decay_rate, order=0))
    ref2 = _reference_order0(x2, jnp.float32(decay_rate))
    assert out2.shape == (T2, N2, 1), out2.shape
    assert jnp.allclose(out2, ref2, atol=1e-5, rtol=1e-5), "padded order-0 mismatch"

    print("KERNEL_OK")
</pallas_src>

<mosaic_0001>
module attributes {stable_mosaic.version = 11 : i64} {
  func.func @_leaky_order0_kernel(%arg0: i32, %arg1: memref<1xf32, #tpu.memory_space<smem>>, %arg2: memref<8x128xbf16, #tpu.memory_space<vmem>>, %arg3: memref<8x1xf32, #tpu.memory_space<vmem>>, %arg4: memref<8x128xf32, #tpu.memory_space<vmem>>) attributes {dimension_semantics = [#tpu.dimension_semantics<parallel>], iteration_bounds = array<i64: 1>, scalar_prefetch = 0 : i64, scratch_operands = 0 : i64, tpu.core_type = #tpu.core_type<tc>, window_params = [{transform_indices = @transform_0, window_bounds = array<i64: 1>}, {transform_indices = @transform_1, window_bounds = array<i64: 8, 128>}, {pipeline_mode = #tpu.pipeline_mode<synchronous>, transform_indices = @transform_2, window_bounds = array<i64: 8, 1>}, {transform_indices = @transform_3, window_bounds = array<i64: 8, 128>}]} {
    %c0 = arith.constant 0 : index
    %0 = memref.load %arg1[%c0] : memref<1xf32, #tpu.memory_space<smem>>
    %1 = vector.broadcast %0 : f32 to vector<1x128xf32>
    %cst = arith.constant 0.000000e+00 : f32
    %2 = vector.broadcast %cst : f32 to vector<1x128xf32>
    %c0_i32 = arith.constant 0 : i32
    %c8_i32 = arith.constant 8 : i32
    %3 = arith.muli %c0_i32, %c8_i32 : i32
    %4 = tpu.assume_multiple %3, 8 : i32
    %5 = arith.index_cast %4 : i32 to index
    %c0_0 = arith.constant 0 : index
    %6 = vector.load %arg2[%5, %c0_0] : memref<8x128xbf16, #tpu.memory_space<vmem>>, vector<8x128xbf16>
    %7 = arith.extf %6 : vector<8x128xbf16> to vector<8x128xf32>
    %8 = arith.index_cast %4 : i32 to index
    %c0_1 = arith.constant 0 : index
    %9 = vector.load %arg3[%8, %c0_1] : memref<8x1xf32, #tpu.memory_space<vmem>>, vector<8x1xf32>
    %10 = arith.mulf %1, %2 : vector<1x128xf32>
    %11 = vector.extract_strided_slice %7 {offsets = [0, 0], sizes = [1, 128], strides = [1, 1]} : vector<8x128xf32> to vector<1x128xf32>
    %12 = arith.addf %10, %11 : vector<1x128xf32>
    %13 = arith.mulf %1, %12 : vector<1x128xf32>
    %14 = vector.extract_strided_slice %7 {offsets = [1, 0], sizes = [1, 128], strides = [1, 1]} : vector<8x128xf32> to vector<1x128xf32>
    %15 = arith.addf %13, %14 : vector<1x128xf32>
    %16 = arith.mulf %1, %15 : vector<1x128xf32>
    %17 = vector.extract_strided_slice %7 {offsets = [2, 0], sizes = [1, 128], strides = [1, 1]} : vector<8x128xf32> to vector<1x128xf32>
    %18 = arith.addf %16, %17 : vector<1x128xf32>
    %19 = arith.mulf %1, %18 : vector<1x128xf32>
    %20 = vector.extract_strided_slice %7 {offsets = [3, 0], sizes = [1, 128], strides = [1, 1]} : vector<8x128xf32> to vector<1x128xf32>
    %21 = arith.addf %19, %20 : vector<1x128xf32>
    %22 = arith.mulf %1, %21 : vector<1x128xf32>
    %23 = vector.extract_strided_slice %7 {offsets = [4, 0], sizes = [1, 128], strides = [1, 1]} : vector<8x128xf32> to vector<1x128xf32>
    %24 = arith.addf %22, %23 : vector<1x128xf32>
    %25 = arith.mulf %1, %24 : vector<1x128xf32>
    %26 = vector.extract_strided_slice %7 {offsets = [5, 0], sizes = [1, 128], strides = [1, 1]} : vector<8x128xf32> to vector<1x128xf32>
    %27 = arith.addf %25, %26 : vector<1x128xf32>
    %28 = arith.mulf %1, %27 : vector<1x128xf32>
    %29 = vector.extract_strided_slice %7 {offsets = [6, 0], sizes = [1, 128], strides = [1, 1]} : vector<8x128xf32> to vector<1x128xf32>
    %30 = arith.addf %28, %29 : vector<1x128xf32>
    %31 = arith.mulf %1, %30 : vector<1x128xf32>
    %32 = vector.extract_strided_slice %7 {offsets = [7, 0], sizes = [1, 128], strides = [1, 1]} : vector<8x128xf32> to vector<1x128xf32>
    %33 = arith.addf %31, %32 : vector<1x128xf32>
    %34 = tpu.concatenate %12, %15, %18, %21, %24, %27, %30, %33 in 0 : vector<1x128xf32>, vector<1x128xf32>, vector<1x128xf32>, vector<1x128xf32>, vector<1x128xf32>, vector<1x128xf32>, vector<1x128xf32>, vector<1x128xf32> -> vector<8x128xf32>
    %cst_2 = arith.constant 1.000000e+00 : f32
    %35 = vector.broadcast %cst_2 : f32 to vector<8x128xf32>
    %36 = arith.addf %34, %35 : vector<8x128xf32>
    %37 = vector.broadcast %9 : vector<8x1xf32> to vector<8x128xf32>
    %38 = arith.mulf %36, %37 : vector<8x128xf32>
    %39 = arith.index_cast %4 : i32 to index
    %c0_3 = arith.constant 0 : index
    %40 = vector.load %arg4[%39, %c0_3] : memref<8x128xf32, #tpu.memory_space<vmem>>, vector<8x128xf32>
    tpu.vector_store %arg4[%39, %c0_3], %38 {strides = array<i32>} : memref<8x128xf32, #tpu.memory_space<vmem>>, vector<8x128xf32>,
    %c1_i32 = arith.constant 1 : i32
    return
  }
  func.func @transform_0(%arg0: i32) -> i32 {
    %c0_i32 = arith.constant 0 : i32
    %c0_i32_0 = arith.constant 0 : i32
    return %c0_i32 : i32
  }
  func.func @transform_1(%arg0: i32) -> (i32, i32) {
    %c0_i32 = arith.constant 0 : i32
    %c0_i32_0 = arith.constant 0 : i32
    return %c0_i32, %arg0 : i32, i32
  }
  func.func @transform_2(%arg0: i32) -> (i32, i32) {
    %c0_i32 = arith.constant 0 : i32
    %c0_i32_0 = arith.constant 0 : i32
    %c0_i32_1 = arith.constant 0 : i32
    return %c0_i32, %c0_i32_0 : i32, i32
  }
  func.func @transform_3(%arg0: i32) -> (i32, i32) {
    %c0_i32 = arith.constant 0 : i32
    %c0_i32_0 = arith.constant 0 : i32
    return %c0_i32, %arg0 : i32, i32
  }
}

</mosaic_0001>

<llo_original>
// kernel: tpu_custom_call.1
$region0: #{tpu_custom_call.1}
  #allocation0 [shape = 'u32[]', space=smem, size = 0x4, offset = 0x4, fixed_abs, tag = 'smem constant byte address 0x4 - core index']
  #allocation1 [shape = 'u32[144,128]{1,0:T(1,128)}', space=vmem, size = 0x12000, scoped, tag = 'internal scratch']
  #allocation2 [shape = 'f32[1]{0:T(128)S(6)}', space=smem, size = 0x200, scoped, tag = 'scoped memory for tpu_custom_call.1']
  %s0 = inlined_call_operand.<no memory space> [shape: f32[1], index: 0, kind: input, shape index: {}]
  %s1 = inlined_call_operand.vmem [shape: bf16[8,128], index: 1, kind: input, shape index: {}]
  %s2 = inlined_call_operand.vmem [shape: f32[8,1], index: 2, kind: input, shape index: {}]
  %s3 = inlined_call_operand.hbm [shape: f32[8,128], index: 3, kind: output, shape index: {}]
  %s4 = sld [smem:[#allocation0]]
  $region22: #{tpu_custom_call.1} parent=0
    _
  %s6 = ssub.s32 1, %s4
  %s7 = scalar_select 0, %s6, %s4
  %8 = sst [smem:[#allocation2]] %s0
  $region1: #{tpu_custom_call.1} parent=0
    #allocation3 [shape = 'u8[4096]{0}', space=vmem, size = 0x1000, scoped, tag = 'output window, operand 0, single buffered']
    #allocation4 [shape = 's32[1]{0}', space=sflag, size = 0x4, scoped, tag = 'scoped memory for tpu_custom_call.1']
    %9 = vsyncpa [#allocation4], 0
    // Predicated region
    $region2: #{tpu_custom_call.1} parent=1 // pred_check
      _
    $region3: #{tpu_custom_call.1} parent=1 // pred_check_branch
      %11 = sbr.rel (0) target = $region5
    $region4: #{tpu_custom_call.1} parent=1 // pred_region
      _
    $region5: #{tpu_custom_call.1} parent=1 // pred_fallthru
      _
    // Predicated region
    $region6: #{tpu_custom_call.1} parent=1 // pred_check
      _
    $region7: #{tpu_custom_call.1} parent=1 // pred_check_branch
      %13 = sbr.rel (0) target = $region9
    $region8: #{tpu_custom_call.1} parent=1 // pred_region
      _
    $region9: #{tpu_custom_call.1} parent=1 // pred_fallthru
      _
    // Predicated region
    $region10: #{tpu_custom_call.1} parent=1 // pred_check
      _
    $region11: #{tpu_custom_call.1} parent=1 // pred_check_branch
      %15 = sbr.rel (0) target = $region13
    $region12: #{tpu_custom_call.1} parent=1 // pred_region
      _
    $region13: #{tpu_custom_call.1} parent=1 // pred_fallthru
      _
    %s16 = sld [smem:[#allocation2]]
    %v17 = vstv %s16
    %v18 = vld [vmem:[%s1] sm:$0xf]
    %v19 = vunpack.c.l.bf16 %v18
    %v20 = vld [vmem:[%s2] sm:$0xff]
    %v21 = vmul.f32 %v17, 0.0
    %v22 = vadd.f32 %v21, %v19
    %v23 = vmul.f32 %v17, %v22
    %v25 = vrot.slane %v19, 1
    %v27 = vadd.f32 %v23, %v25
    %v28 = vmul.f32 %v17, %v27
    %v29 = vrot.slane %v19, 2
    %v31 = vadd.f32 %v28, %v29
    %v32 = vmul.f32 %v17, %v31
    %v33 = vrot.slane %v19, 3
    %v35 = vadd.f32 %v32, %v33
    %v36 = vmul.f32 %v17, %v35
    %v37 = vrot.slane %v19, 4
    %v39 = vadd.f32 %v36, %v37
    %v40 = vmul.f32 %v17, %v39
    %v41 = vrot.slane %v19, 5
    %v43 = vadd.f32 %v40, %v41
    %v44 = vmul.f32 %v17, %v43
    %v45 = vrot.slane %v19, 6
    %v47 = vadd.f32 %v44, %v45
    %v48 = vmul.f32 %v17, %v47
    %v49 = vrot.slane %v19, 7
    %v51 = vadd.f32 %v48, %v49
    %v53 = vrot.slane %v27, 7
    %v56 = vrot.slane %v31, 6
    %v59 = vrot.slane %v35, 5
    %v62 = vrot.slane %v39, 4
    %v65 = vrot.slane %v43, 3
    %v68 = vrot.slane %v47, 2
    %v71 = vrot.slane %v51, 1
    %vm73 = vcmask 1040384
    %v74 = vsel %vm73, %v22, %v53
    %vm75 = vcmask 1041408
    %v76 = vsel %vm75, %v74, %v56
    %vm77 = vcmask 1042432
    %v78 = vsel %vm77, %v76, %v59
    %vm79 = vcmask 1043456
    %v80 = vsel %vm79, %v78, %v62
    %vm81 = vcmask 1044480
    %v82 = vsel %vm81, %v80, %v65
    %vm83 = vcmask 1045504
    %v84 = vsel %vm83, %v82, %v68
    %vm85 = vcmask 1046528
    %v86 = vsel %vm85, %v84, %v71
    %v87 = vadd.f32 %v86, 1.0
    %89 = vset.pattern.permute.xlu0 0
    %90 = vperm.xlu0 %89, %v20
    %v91 = vpop.permute.xlu0 %90
    %v93 = vmul.f32 %v87, %v91
    %94 = vst [vmem:[#allocation3] sm:$0xff] %v93
    // Predicated region
    $region14: #{tpu_custom_call.1} parent=1 // pred_check
      _
    $region15: #{tpu_custom_call.1} parent=1 // pred_check_branch
      %96 = sbr.rel (0) target = $region17
    $region16: #{tpu_custom_call.1} parent=1 // pred_region
      %s98 = ssub.s32 128, 128
      %99 = vsyncadd [#allocation4], %s98
      %s101 = sshll.u32 [#allocation3], 4
      %s102 = int_to_ptr.vmem [resolvable:$true] %s101
      %104 = dma.vmem_to_hbm [thread:$0]  %s102, 128, %s3, [#allocation4]
    $region17: #{tpu_custom_call.1} parent=1 // pred_fallthru
      _
    // Predicated region
    $region18: #{tpu_custom_call.1} parent=1 // pred_check
      _
    $region19: #{tpu_custom_call.1} parent=1 // pred_check_branch
      %106 = sbr.rel (0) target = $region21
    $region20: #{tpu_custom_call.1} parent=1 // pred_region
      %107 = dma.done [#allocation4], 128
    $region21: #{tpu_custom_call.1} parent=1 // pred_fallthru
      _
    %108 = vsyncpa [#allocation4], 1

</llo_original>
